<compile_context>
chip_gen: v7x
topology: tpu7x:2x2x1
jax: 0.10.0
libtpu: 0.0.40
codegen_flags: <defaults>
</compile_context>

<pallas_src>
import math

import jax
import jax.numpy as jnp
from jax import lax
from jax.experimental import pallas as pl
from jax.experimental.pallas import tpu as pltpu


def _round_up(x, m):
    return ((x + m - 1) // m) * m


def _dqn_kernel(x_ref, w1_ref, b1_ref, w2_ref, b2_ref, w3t_ref, b3t_ref, o_ref):
    # x arrives f32; cast to bf16 on the VPU (VPU slots have huge slack here).
    x = x_ref[...].astype(jnp.bfloat16)
    # fc1 + ReLU (bf16 inputs, f32 accumulation on the MXU)
    h1 = jnp.dot(x, w1_ref[...], preferred_element_type=jnp.float32)
    h1 = jnp.maximum(h1 + b1_ref[...], 0.0).astype(jnp.bfloat16)
    # fc2 + ReLU
    h2 = jnp.dot(h1, w2_ref[...], preferred_element_type=jnp.float32)
    h2 = jnp.maximum(h2 + b2_ref[...], 0.0).astype(jnp.bfloat16)
    # fc3, computed transposed:
    #   out^T[o, b] = sum_k w3t[o, k] * h2[b, k]
    # -> (out_pad, TILE_B) result, batch on the lane axis (lane-dense store).
    out_t = lax.dot_general(
        w3t_ref[...], h2,
        dimension_numbers=(((1,), (1,)), ((), ())),
        preferred_element_type=jnp.float32)
    o_ref[...] = (out_t + b3t_ref[...]).astype(o_ref.dtype)


def prepare_dqn_params(params):
    """One-time pad/cast of the parameters for the kernel.

    Returns dict with:
      w1 (in,128) bf16, b1 (1,128) f32, w2 (128,128) bf16, b2 (1,128) f32,
      w3t (out_pad,128) bf16, b3t (out_pad,1) f32, out_size (python int).
    """
    out_size = params["w3"].shape[1]
    out_pad = _round_up(out_size, 8)          # sublane padding only
    w3t = params["w3"].T                      # (out, hidden)
    b3t = params["b3"].T                      # (out, 1)
    if out_pad != out_size:
        w3t = jnp.pad(w3t, ((0, out_pad - out_size), (0, 0)))
        b3t = jnp.pad(b3t, ((0, out_pad - out_size), (0, 0)))
    return {
        "w1": params["w1"].astype(jnp.bfloat16),
        "b1": params["b1"].astype(jnp.float32),
        "w2": params["w2"].astype(jnp.bfloat16),
        "b2": params["b2"].astype(jnp.float32),
        "w3t": w3t.astype(jnp.bfloat16),
        "b3t": b3t.astype(jnp.float32),
        "out_size": out_size,
    }


def deep_q_network_forward(x, prep, tile_b=2048):
    """Full DQN forward in one Pallas kernel.

    x: (B, input_size) float32
    prep: output of prepare_dqn_params().
    """
    B, in_size = x.shape
    hidden = prep["w1"].shape[1]
    out_pad = prep["w3t"].shape[0]
    out_size = prep["out_size"]

    # Batch tiling:
    #  - small batch: one full-batch tile (block dims == array dims, legal);
    #  - otherwise: TILE_B multiple of 128 (lane axis of the transposed output)
    #    capped at ~B/2 so the grid has >=2 steps for v7x's two TensorCores.
    if B <= 256:
        TILE_B = _round_up(max(B, 8), 8)
        B_pad = TILE_B
    else:
        half = _round_up(-(-B // 2), 128)
        TILE_B = min(_round_up(tile_b, 128), half)
        B_pad = _round_up(B, TILE_B)

    x_p = x.astype(jnp.float32)
    if B_pad != B:
        x_p = jnp.pad(x_p, ((0, B_pad - B), (0, 0)))

    num_tiles = B_pad // TILE_B

    # Weights/biases: constant index_map -> DMA'd once, VMEM-resident.
    x_spec = pl.BlockSpec((TILE_B, in_size), lambda i: (i, 0))
    w1_spec = pl.BlockSpec((in_size, hidden), lambda i: (0, 0))
    b1_spec = pl.BlockSpec((1, hidden), lambda i: (0, 0))
    w2_spec = pl.BlockSpec((hidden, hidden), lambda i: (0, 0))
    b2_spec = pl.BlockSpec((1, hidden), lambda i: (0, 0))
    w3t_spec = pl.BlockSpec((out_pad, hidden), lambda i: (0, 0))
    b3t_spec = pl.BlockSpec((out_pad, 1), lambda i: (0, 0))
    out_spec = pl.BlockSpec((out_pad, TILE_B), lambda i: (0, i))

    flops = 2 * B_pad * (in_size * hidden + hidden * hidden + hidden * out_pad)
    bytes_accessed = (
        B_pad * in_size * 4                                               # x f32
        + (in_size * hidden + hidden * hidden + out_pad * hidden) * 2     # bf16 weights
        + (2 * hidden + out_pad) * 4                                      # f32 biases
        + out_pad * B_pad * 4                                             # transposed f32 out
    )

    out_t = pl.pallas_call(
        _dqn_kernel,
        out_shape=jax.ShapeDtypeStruct((out_pad, B_pad), jnp.float32),
        grid_spec=pltpu.PrefetchScalarGridSpec(
            num_scalar_prefetch=0,
            grid=(num_tiles,),
            in_specs=[x_spec, w1_spec, b1_spec, w2_spec, b2_spec,
                      w3t_spec, b3t_spec],
            out_specs=out_spec,
        ),
        compiler_params=pltpu.CompilerParams(
            dimension_semantics=("parallel",),
            vmem_limit_bytes=32 * 1024 * 1024),
        cost_estimate=pl.CostEstimate(
            flops=flops, transcendentals=0, bytes_accessed=bytes_accessed),
    )(x_p, prep["w1"], prep["b1"], prep["w2"], prep["b2"],
      prep["w3t"], prep["b3t"])

    # Un-transpose and drop padding outside the kernel (tiny array).
    return out_t[:out_size, :B].T


def init_dqn_params(key, input_size, output_size, hidden=128):
    """Parameter init mimicking the PyTorch module's __init__.

    Weights stored transposed as (in_features, out_features).
    """
    k1, k2, k3, kb1, kb2, kb3 = jax.random.split(key, 6)

    def kaiming_uniform(k, fan_in, fan_out):
        bound = math.sqrt(2.0) * math.sqrt(3.0 / fan_in)
        return jax.random.uniform(
            k, (fan_in, fan_out), jnp.float32, -bound, bound)

    def xavier_uniform(k, fan_in, fan_out):
        bound = math.sqrt(6.0 / (fan_in + fan_out))
        return jax.random.uniform(
            k, (fan_in, fan_out), jnp.float32, -bound, bound)

    def linear_bias(k, fan_in, fan_out):
        bound = 1.0 / math.sqrt(fan_in)
        return jax.random.uniform(
            k, (1, fan_out), jnp.float32, -bound, bound)

    return {
        "w1": kaiming_uniform(k1, input_size, hidden),
        "b1": linear_bias(kb1, input_size, hidden),
        "w2": kaiming_uniform(k2, hidden, hidden),
        "b2": linear_bias(kb2, hidden, hidden),
        "w3": xavier_uniform(k3, hidden, output_size),
        "b3": linear_bias(kb3, hidden, output_size),
    }


def _reference_forward(x, p, cast_bf16=False):
    if cast_bf16:
        x = x.astype(jnp.bfloat16)
        w1, w2, w3 = (p["w1"].astype(jnp.bfloat16),
                      p["w2"].astype(jnp.bfloat16),
                      p["w3"].astype(jnp.bfloat16))
    else:
        w1, w2, w3 = p["w1"], p["w2"], p["w3"]
    h1 = jnp.maximum(
        jnp.dot(x, w1, preferred_element_type=jnp.float32) + p["b1"], 0.0)
    if cast_bf16:
        h1 = h1.astype(jnp.bfloat16)
    h2 = jnp.maximum(
        jnp.dot(h1, w2, preferred_element_type=jnp.float32) + p["b2"], 0.0)
    if cast_bf16:
        h2 = h2.astype(jnp.bfloat16)
    return jnp.dot(h2, w3, preferred_element_type=jnp.float32) + p["b3"]


if __name__ == "__main__":
    key = jax.random.PRNGKey(0)
    k_params, k_x, k_x2 = jax.random.split(key, 3)

    input_size = 16
    output_size = 8

    params = init_dqn_params(k_params, input_size, output_size)
    prep = prepare_dqn_params(params)

    # Small batch: single-tile path (block dims == full array dims).
    x = jax.random.normal(k_x, (8, input_size), jnp.float32)
    out = jax.block_until_ready(deep_q_network_forward(x, prep))
    assert out.shape == (8, output_size)
    ref_bf16 = _reference_forward(x, params, cast_bf16=True)
    assert jnp.allclose(out, ref_bf16, atol=2e-2, rtol=2e-2)
    ref_f32 = _reference_forward(x, params, cast_bf16=False)
    assert jnp.allclose(out, ref_f32, atol=1e-1, rtol=1e-1)

    # Moderate batch: multi-tile path (>=2 grid steps, batch padding,
    # lane-dense transposed output).
    x2 = jax.random.normal(k_x2, (300, input_size), jnp.float32)
    out2 = jax.block_until_ready(deep_q_network_forward(x2, prep))
    assert out2.shape == (300, output_size)
    ref2_bf16 = _reference_forward(x2, params, cast_bf16=True)
    assert jnp.allclose(out2, ref2_bf16, atol=2e-2, rtol=2e-2)

    print("KERNEL_OK")
</pallas_src>

<mosaic_0001>
module attributes {stable_mosaic.version = 11 : i64} {
  func.func @_dqn_kernel(%arg0: i32, %arg1: memref<8x16xf32, #tpu.memory_space<vmem>>, %arg2: memref<16x128xbf16, #tpu.memory_space<vmem>>, %arg3: memref<1x128xf32, #tpu.memory_space<vmem>>, %arg4: memref<128x128xbf16, #tpu.memory_space<vmem>>, %arg5: memref<1x128xf32, #tpu.memory_space<vmem>>, %arg6: memref<8x128xbf16, #tpu.memory_space<vmem>>, %arg7: memref<8x1xf32, #tpu.memory_space<vmem>>, %arg8: memref<8x8xf32, #tpu.memory_space<vmem>>) attributes {dimension_semantics = [#tpu.dimension_semantics<parallel>], iteration_bounds = array<i64: 1>, scalar_prefetch = 0 : i64, scratch_operands = 0 : i64, tpu.core_type = #tpu.core_type<tc>, window_params = [{transform_indices = @transform_0, window_bounds = array<i64: 8, 16>}, {pipeline_mode = #tpu.pipeline_mode<synchronous>, transform_indices = @transform_1, window_bounds = array<i64: 16, 128>}, {pipeline_mode = #tpu.pipeline_mode<synchronous>, transform_indices = @transform_2, window_bounds = array<i64: 1, 128>}, {pipeline_mode = #tpu.pipeline_mode<synchronous>, transform_indices = @transform_3, window_bounds = array<i64: 128, 128>}, {pipeline_mode = #tpu.pipeline_mode<synchronous>, transform_indices = @transform_4, window_bounds = array<i64: 1, 128>}, {pipeline_mode = #tpu.pipeline_mode<synchronous>, transform_indices = @transform_5, window_bounds = array<i64: 8, 128>}, {pipeline_mode = #tpu.pipeline_mode<synchronous>, transform_indices = @transform_6, window_bounds = array<i64: 8, 1>}, {transform_indices = @transform_7, window_bounds = array<i64: 8, 8>}]} {
    %c0 = arith.constant 0 : index
    %c0_0 = arith.constant 0 : index
    %0 = vector.load %arg1[%c0, %c0_0] : memref<8x16xf32, #tpu.memory_space<vmem>>, vector<8x16xf32>
    %1 = arith.truncf %0 : vector<8x16xf32> to vector<8x16xbf16>
    %c0_1 = arith.constant 0 : index
    %c0_2 = arith.constant 0 : index
    %2 = vector.load %arg2[%c0_1, %c0_2] : memref<16x128xbf16, #tpu.memory_space<vmem>>, vector<16x128xbf16>
    %cst = arith.constant dense<0.000000e+00> : vector<8x128xf32>
    %3 = tpu.matmul %1, %2, %cst {dimension_numbers = #tpu.dot_dimension_numbers<[1], [0], [0], [1], [0, 0, 1, 1], [], []>} : vector<8x16xbf16>, vector<16x128xbf16>, vector<8x128xf32> -> vector<8x128xf32>
    %c0_3 = arith.constant 0 : index
    %c0_4 = arith.constant 0 : index
    %4 = vector.load %arg3[%c0_3, %c0_4] : memref<1x128xf32, #tpu.memory_space<vmem>>, vector<1x128xf32>
    %5 = vector.broadcast %4 : vector<1x128xf32> to vector<8x128xf32>
    %6 = arith.addf %3, %5 : vector<8x128xf32>
    %cst_5 = arith.constant 0.000000e+00 : f32
    %7 = vector.broadcast %cst_5 : f32 to vector<8x128xf32>
    %8 = arith.maximumf %6, %7 : vector<8x128xf32>
    %9 = arith.truncf %8 : vector<8x128xf32> to vector<8x128xbf16>
    %c0_6 = arith.constant 0 : index
    %c0_7 = arith.constant 0 : index
    %10 = vector.load %arg4[%c0_6, %c0_7] : memref<128x128xbf16, #tpu.memory_space<vmem>>, vector<128x128xbf16>
    %cst_8 = arith.constant dense<0.000000e+00> : vector<8x128xf32>
    %11 = tpu.matmul %9, %10, %cst_8 {dimension_numbers = #tpu.dot_dimension_numbers<[1], [0], [0], [1], [0, 0, 1, 1], [], []>} : vector<8x128xbf16>, vector<128x128xbf16>, vector<8x128xf32> -> vector<8x128xf32>
    %c0_9 = arith.constant 0 : index
    %c0_10 = arith.constant 0 : index
    %12 = vector.load %arg5[%c0_9, %c0_10] : memref<1x128xf32, #tpu.memory_space<vmem>>, vector<1x128xf32>
    %13 = vector.broadcast %12 : vector<1x128xf32> to vector<8x128xf32>
    %14 = arith.addf %11, %13 : vector<8x128xf32>
    %cst_11 = arith.constant 0.000000e+00 : f32
    %15 = vector.broadcast %cst_11 : f32 to vector<8x128xf32>
    %16 = arith.maximumf %14, %15 : vector<8x128xf32>
    %17 = arith.truncf %16 : vector<8x128xf32> to vector<8x128xbf16>
    %c0_12 = arith.constant 0 : index
    %c0_13 = arith.constant 0 : index
    %18 = vector.load %arg6[%c0_12, %c0_13] : memref<8x128xbf16, #tpu.memory_space<vmem>>, vector<8x128xbf16>
    %cst_14 = arith.constant dense<0.000000e+00> : vector<8x8xf32>
    %19 = tpu.matmul %18, %17, %cst_14 {dimension_numbers = #tpu.dot_dimension_numbers<[1], [1], [0], [0], [0, 0, 1, 0], [], []>} : vector<8x128xbf16>, vector<8x128xbf16>, vector<8x8xf32> -> vector<8x8xf32>
    %c0_15 = arith.constant 0 : index
    %c0_16 = arith.constant 0 : index
    %20 = vector.load %arg7[%c0_15, %c0_16] : memref<8x1xf32, #tpu.memory_space<vmem>>, vector<8x1xf32>
    %21 = vector.broadcast %20 : vector<8x1xf32> to vector<8x8xf32>
    %22 = arith.addf %19, %21 : vector<8x8xf32>
    %c0_17 = arith.constant 0 : index
    %c0_18 = arith.constant 0 : index
    %23 = vector.load %arg8[%c0_17, %c0_18] : memref<8x8xf32, #tpu.memory_space<vmem>>, vector<8x8xf32>
    tpu.vector_store %arg8[%c0_17, %c0_18], %22 {strides = array<i32>} : memref<8x8xf32, #tpu.memory_space<vmem>>, vector<8x8xf32>,
    return
  }
  func.func @transform_0(%arg0: i32) -> (i32, i32) {
    %c0_i32 = arith.constant 0 : i32
    %c0_i32_0 = arith.constant 0 : i32
    return %arg0, %c0_i32 : i32, i32
  }
  func.func @transform_1(%arg0: i32) -> (i32, i32) {
    %c0_i32 = arith.constant 0 : i32
    %c0_i32_0 = arith.constant 0 : i32
    %c0_i32_1 = arith.constant 0 : i32
    return %c0_i32, %c0_i32_0 : i32, i32
  }
  func.func @transform_2(%arg0: i32) -> (i32, i32) {
    %c0_i32 = arith.constant 0 : i32
    %c0_i32_0 = arith.constant 0 : i32
    %c0_i32_1 = arith.constant 0 : i32
    return %c0_i32, %c0_i32_0 : i32, i32
  }
  func.func @transform_3(%arg0: i32) -> (i32, i32) {
    %c0_i32 = arith.constant 0 : i32
    %c0_i32_0 = arith.constant 0 : i32
    %c0_i32_1 = arith.constant 0 : i32
    return %c0_i32, %c0_i32_0 : i32, i32
  }
  func.func @transform_4(%arg0: i32) -> (i32, i32) {
    %c0_i32 = arith.constant 0 : i32
    %c0_i32_0 = arith.constant 0 : i32
    %c0_i32_1 = arith.constant 0 : i32
    return %c0_i32, %c0_i32_0 : i32, i32
  }
  func.func @transform_5(%arg0: i32) -> (i32, i32) {
    %c0_i32 = arith.constant 0 : i32
    %c0_i32_0 = arith.constant 0 : i32
    %c0_i32_1 = arith.constant 0 : i32
    return %c0_i32, %c0_i32_0 : i32, i32
  }
  func.func @transform_6(%arg0: i32) -> (i32, i32) {
    %c0_i32 = arith.constant 0 : i32
    %c0_i32_0 = arith.constant 0 : i32
    %c0_i32_1 = arith.constant 0 : i32
    return %c0_i32, %c0_i32_0 : i32, i32
  }
  func.func @transform_7(%arg0: i32) -> (i32, i32) {
    %c0_i32 = arith.constant 0 : i32
    %c0_i32_0 = arith.constant 0 : i32
    return %c0_i32, %arg0 : i32, i32
  }
}

</mosaic_0001>

<llo_original>
// kernel: tpu_custom_call.1
$region0: #{tpu_custom_call.1}
  #allocation0 [shape = 'u32[]', space=smem, size = 0x4, offset = 0x4, fixed_abs, tag = 'smem constant byte address 0x4 - core index']
  #allocation1 [shape = 'u32[144,128]{1,0:T(1,128)}', space=vmem, size = 0x12000, scoped, tag = 'internal scratch']
  %s0 = inlined_call_operand.vmem [shape: f32[8,16], index: 0, kind: input, shape index: {}]
  %s1 = inlined_call_operand.hbm [shape: bf16[16,128], index: 1, kind: input, shape index: {}]
  %s2 = inlined_call_operand.vmem [shape: f32[1,128], index: 2, kind: input, shape index: {}]
  %s3 = inlined_call_operand.hbm [shape: bf16[128,128], index: 3, kind: input, shape index: {}]
  %s4 = inlined_call_operand.vmem [shape: f32[1,128], index: 4, kind: input, shape index: {}]
  %s5 = inlined_call_operand.vmem [shape: bf16[8,128], index: 5, kind: input, shape index: {}]
  %s6 = inlined_call_operand.vmem [shape: f32[8,1], index: 6, kind: input, shape index: {}]
  %s7 = inlined_call_operand.hbm [shape: f32[8,8], index: 7, kind: output, shape index: {}]
  %s8 = sld [smem:[#allocation0]]
  $region46: #{tpu_custom_call.1} parent=0
    _
  %s10 = ssub.s32 1, %s8
  %s11 = scalar_select 0, %s10, %s8
  $region1: #{tpu_custom_call.1} parent=0
    #allocation2 [shape = 'u8[4096]{0}', space=vmem, size = 0x1000, scoped, tag = 'input window, operand 1, single buffered']
    #allocation3 [shape = 's32[1]{0}', space=sflag, size = 0x4, scoped, tag = 'scoped memory for tpu_custom_call.1']
    #allocation4 [shape = 's32[1]{0}', space=sflag, size = 0x4, scoped, tag = 'scoped memory for tpu_custom_call.1']
    #allocation5 [shape = 'u8[32768]{0}', space=vmem, size = 0x8000, scoped, tag = 'input window, operand 3, single buffered']
    #allocation6 [shape = 's32[1]{0}', space=sflag, size = 0x4, scoped, tag = 'scoped memory for tpu_custom_call.1']
    #allocation7 [shape = 'u8[4096]{0}', space=vmem, size = 0x1000, scoped, tag = 'output window, operand 0, single buffered']
    %12 = vsyncpa [#allocation3], 0
    %13 = vsyncpa [#allocation6], 0
    %14 = vsyncpa [#allocation4], 0
    // Predicated region
    $region2: #{tpu_custom_call.1} parent=1 // pred_check
      _
    $region3: #{tpu_custom_call.1} parent=1 // pred_check_branch
      %16 = sbr.rel (0) target = $region5
    $region4: #{tpu_custom_call.1} parent=1 // pred_region
      _
    $region5: #{tpu_custom_call.1} parent=1 // pred_fallthru
      _
    // Predicated region
    $region6: #{tpu_custom_call.1} parent=1 // pred_check
      _
    $region7: #{tpu_custom_call.1} parent=1 // pred_check_branch
      %18 = sbr.rel (0) target = $region9
    $region8: #{tpu_custom_call.1} parent=1 // pred_region
      %s20 = ssub.s32 128, 128
      %21 = vsyncadd [#allocation3], %s20
      %s22 = sshll.u32 [#allocation2], 4
      %s23 = int_to_ptr.vmem [resolvable:$true] %s22
      %28 = dma.hbm_to_vmem [thread:$0]  %s1, 128, %s23, [#allocation3], 64, 64, 4
    $region9: #{tpu_custom_call.1} parent=1 // pred_fallthru
      _
    // Predicated region
    $region10: #{tpu_custom_call.1} parent=1 // pred_check
      _
    $region11: #{tpu_custom_call.1} parent=1 // pred_check_branch
      %30 = sbr.rel (0) target = $region13
    $region12: #{tpu_custom_call.1} parent=1 // pred_region
      _
    $region13: #{tpu_custom_call.1} parent=1 // pred_fallthru
      _
    // Predicated region
    $region14: #{tpu_custom_call.1} parent=1 // pred_check
      _
    $region15: #{tpu_custom_call.1} parent=1 // pred_check_branch
      %32 = sbr.rel (0) target = $region17
    $region16: #{tpu_custom_call.1} parent=1 // pred_region
      %s34 = ssub.s32 1024, 1024
      %35 = vsyncadd [#allocation6], %s34
      %s36 = sshll.u32 [#allocation5], 4
      %s37 = int_to_ptr.vmem [resolvable:$true] %s36
      %42 = dma.hbm_to_vmem [thread:$0]  %s3, 1024, %s37, [#allocation6], 64, 64, 4
    $region17: #{tpu_custom_call.1} parent=1 // pred_fallthru
      _
    // Predicated region
    $region18: #{tpu_custom_call.1} parent=1 // pred_check
      _
    $region19: #{tpu_custom_call.1} parent=1 // pred_check_branch
      %44 = sbr.rel (0) target = $region21
    $region20: #{tpu_custom_call.1} parent=1 // pred_region
      _
    $region21: #{tpu_custom_call.1} parent=1 // pred_fallthru
      _
    // Predicated region
    $region22: #{tpu_custom_call.1} parent=1 // pred_check
      _
    $region23: #{tpu_custom_call.1} parent=1 // pred_check_branch
      %46 = sbr.rel (0) target = $region25
    $region24: #{tpu_custom_call.1} parent=1 // pred_region
      _
    $region25: #{tpu_custom_call.1} parent=1 // pred_fallthru
      _
    // Predicated region
    $region26: #{tpu_custom_call.1} parent=1 // pred_check
      _
    $region27: #{tpu_custom_call.1} parent=1 // pred_check_branch
      %48 = sbr.rel (0) target = $region29
    $region28: #{tpu_custom_call.1} parent=1 // pred_region
      _
    $region29: #{tpu_custom_call.1} parent=1 // pred_fallthru
      _
    // Predicated region
    $region30: #{tpu_custom_call.1} parent=1 // pred_check
      _
    $region31: #{tpu_custom_call.1} parent=1 // pred_check_branch
      %50 = sbr.rel (0) target = $region33
    $region32: #{tpu_custom_call.1} parent=1 // pred_region
      %51 = dma.done [#allocation3], 128
    $region33: #{tpu_custom_call.1} parent=1 // pred_fallthru
      _
    // Predicated region
    $region34: #{tpu_custom_call.1} parent=1 // pred_check
      _
    $region35: #{tpu_custom_call.1} parent=1 // pred_check_branch
      %53 = sbr.rel (0) target = $region37
    $region36: #{tpu_custom_call.1} parent=1 // pred_region
      %54 = dma.done [#allocation6], 1024
    $region37: #{tpu_custom_call.1} parent=1 // pred_fallthru
      _
    %v56 = vld [vmem:[%s0] sm:$0xff]
    %v57 = vpack.c.bf16 %v56, %v56
    %v58 = vld [vmem:[#allocation2] sm:$0xf]
    %v59 = vld [vmem:[#allocation2 + $0x4] sm:$0xf]
    %v60 = vld [vmem:[%s2] sm:$0x1]
    %v62 = vlaneseq
    %v63 = vshrl.u32 %v62, 7
    %v64 = vsub.s32 0, %v63
    %v65 = vrot.slane %v60, %v64
    %v69 = vunpack.c.l.b16 %v58
    %v70 = vunpack.c.l.b16 %v59
    %v71 = vpack.c.b16 %v70, %v69
    %vm73 = vcmask 130048
    %v75 = vsel %vm73, %v57, 0
    %77 = vmatprep.subr.bf16.mxu0 0
    %78 = vmatpush1.bf16.msra.mxu0 %v71
    %79 = vmatprep.subr.bf16.mxu0 0
    %80 = vmatpush1.bf16.msra.mxu0 0
    %81 = vmatprep.subr.bf16.mxu0 0
    %82 = vmatpush1.bf16.msra.mxu0 0
    %83 = vmatprep.subr.bf16.mxu0 0
    %84 = vmatpush1.bf16.msra.mxu0 0
    %85 = vmatprep.subr.bf16.mxu0 0
    %86 = vmatpush1.bf16.msra.mxu0 0
    %87 = vmatprep.subr.bf16.mxu0 0
    %88 = vmatpush1.bf16.msra.mxu0 0
    %89 = vmatprep.subr.bf16.mxu0 0
    %90 = vmatpush1.bf16.msra.mxu0 0
    %91 = vmatprep.subr.bf16.mxu0 0
    %92 = vmatpush1.bf16.msra.mxu0 0
    %93 = vmatprep.subr.bf16.mxu0 0
    %94 = vmatpush1.bf16.msra.mxu0 0
    %95 = vmatprep.subr.bf16.mxu0 0
    %96 = vmatpush1.bf16.msra.mxu0 0
    %97 = vmatprep.subr.bf16.mxu0 0
    %98 = vmatpush1.bf16.msra.mxu0 0
    %99 = vmatprep.subr.bf16.mxu0 0
    %100 = vmatpush1.bf16.msra.mxu0 0
    %101 = vmatprep.subr.bf16.mxu0 0
    %102 = vmatpush1.bf16.msra.mxu0 0
    %103 = vmatprep.subr.bf16.mxu0 0
    %104 = vmatpush1.bf16.msra.mxu0 0
    %105 = vmatprep.subr.bf16.mxu0 0
    %106 = vmatpush1.bf16.msra.mxu0 0
    %107 = vmatprep.subr.bf16.mxu0 0
    %108 = vmatpush1.bf16.msra.mxu0 0
    %109 = vmatprep.mubr.bf16.mxu0 0
    %110 = vmatmul.mubr.bf16.gmra.mrb[0].mxu0 %v75
    %v111 = vpop.f32.mrb[0].mxu0
    %v112 = vadd.f32 %v65, %v111
    %v113 = vpop.f32.mrb[0].mxu0
    %v114 = vpop.f32.mrb[0].mxu0
    %v115 = vpop.f32.mrb[0].mxu0
    %116 = vdwg.mxu0
    %v117 = vmax.f32 %v112, 0.0
    %v118 = vpack.c.bf16 %v117, %v117
    %v119 = vld [vmem:[#allocation5] sm:$0xf]
    %v120 = vld [vmem:[#allocation5 + $0x4] sm:$0xf]
    %v121 = vld [vmem:[#allocation5 + $0x8] sm:$0xf]
    %v122 = vld [vmem:[#allocation5 + $0xc] sm:$0xf]
    %v123 = vld [vmem:[#allocation5 + $0x10] sm:$0xf]
    %v124 = vld [vmem:[#allocation5 + $0x14] sm:$0xf]
    %v125 = vld [vmem:[#allocation5 + $0x18] sm:$0xf]
    %v126 = vld [vmem:[#allocation5 + $0x1c] sm:$0xf]
    %v127 = vld [vmem:[#allocation5 + $0x20] sm:$0xf]
    %v128 = vld [vmem:[#allocation5 + $0x24] sm:$0xf]
    %v129 = vld [vmem:[#allocation5 + $0x28] sm:$0xf]
    %v130 = vld [vmem:[#allocation5 + $0x2c] sm:$0xf]
    %v131 = vld [vmem:[#allocation5 + $0x30] sm:$0xf]
    %v132 = vld [vmem:[#allocation5 + $0x34] sm:$0xf]
    %v133 = vld [vmem:[#allocation5 + $0x38] sm:$0xf]
    %v134 = vld [vmem:[#allocation5 + $0x3c] sm:$0xf]
    %v135 = vld [vmem:[%s4] sm:$0x1]
    %v137 = vlaneseq
    %v138 = vshrl.u32 %v137, 7
    %v139 = vsub.s32 0, %v138
    %v140 = vrot.slane %v135, %v139
    %v158 = vunpack.c.l.b16 %v119
    %v159 = vunpack.c.l.b16 %v120
    %v160 = vunpack.c.l.b16 %v121
    %v161 = vunpack.c.l.b16 %v122
    %v162 = vunpack.c.l.b16 %v123
    %v163 = vunpack.c.l.b16 %v124
    %v164 = vunpack.c.l.b16 %v125
    %v165 = vunpack.c.l.b16 %v126
    %v166 = vunpack.c.l.b16 %v127
    %v167 = vunpack.c.l.b16 %v128
    %v168 = vunpack.c.l.b16 %v129
    %v169 = vunpack.c.l.b16 %v130
    %v170 = vunpack.c.l.b16 %v131
    %v171 = vunpack.c.l.b16 %v132
    %v172 = vunpack.c.l.b16 %v133
    %v173 = vunpack.c.l.b16 %v134
    %v174 = vpack.c.b16 %v159, %v158
    %v175 = vpack.c.b16 %v161, %v160
    %v176 = vpack.c.b16 %v163, %v162
    %v177 = vpack.c.b16 %v165, %v164
    %v178 = vpack.c.b16 %v167, %v166
    %v179 = vpack.c.b16 %v169, %v168
    %v180 = vpack.c.b16 %v171, %v170
    %v181 = vpack.c.b16 %v173, %v172
    %190 = vmatprep.subr.bf16.mxu0 0
    %191 = vmatpush1.bf16.msra.mxu0 %v174
    %192 = vmatprep.subr.bf16.mxu0 0
    %193 = vmatpush1.bf16.msra.mxu0 %v175
    %194 = vmatprep.subr.bf16.mxu0 0
    %195 = vmatpush1.bf16.msra.mxu0 %v176
    %196 = vmatprep.subr.bf16.mxu0 0
    %197 = vmatpush1.bf16.msra.mxu0 %v177
    %198 = vmatprep.subr.bf16.mxu0 0
    %199 = vmatpush1.bf16.msra.mxu0 %v178
    %200 = vmatprep.subr.bf16.mxu0 0
    %201 = vmatpush1.bf16.msra.mxu0 %v179
    %202 = vmatprep.subr.bf16.mxu0 0
    %203 = vmatpush1.bf16.msra.mxu0 %v180
    %204 = vmatprep.subr.bf16.mxu0 0
    %205 = vmatpush1.bf16.msra.mxu0 %v181
    %206 = vmatprep.subr.bf16.mxu0 0
    %207 = vmatpush1.bf16.msra.mxu0 0
    %208 = vmatprep.subr.bf16.mxu0 0
    %209 = vmatpush1.bf16.msra.mxu0 0
    %210 = vmatprep.subr.bf16.mxu0 0
    %211 = vmatpush1.bf16.msra.mxu0 0
    %212 = vmatprep.subr.bf16.mxu0 0
    %213 = vmatpush1.bf16.msra.mxu0 0
    %214 = vmatprep.subr.bf16.mxu0 0
    %215 = vmatpush1.bf16.msra.mxu0 0
    %216 = vmatprep.subr.bf16.mxu0 0
    %217 = vmatpush1.bf16.msra.mxu0 0
    %218 = vmatprep.subr.bf16.mxu0 0
    %219 = vmatpush1.bf16.msra.mxu0 0
    %220 = vmatprep.subr.bf16.mxu0 0
    %221 = vmatpush1.bf16.msra.mxu0 0
    %222 = vmatprep.mubr.bf16.mxu0 0
    %223 = vmatmul.mubr.bf16.gmra.mrb[0].mxu0 %v118
    %v224 = vpop.f32.mrb[0].mxu0
    %v225 = vadd.f32 %v140, %v224
    %v226 = vpop.f32.mrb[0].mxu0
    %v227 = vpop.f32.mrb[0].mxu0
    %v228 = vpop.f32.mrb[0].mxu0
    %229 = vdwg.mxu0
    %v230 = vmax.f32 %v225, 0.0
    %v231 = vpack.c.bf16 %v230, %v230
    %v232 = vld [vmem:[%s5] sm:$0xf]
    %v233 = vld [vmem:[%s6] sm:$0xff]
    %235 = vset.pattern.permute.xlu0 0
    %236 = vperm.xlu0 %235, %v233
    %v237 = vpop.permute.xlu0 %236
    %239 = vmatprep.subr.bf16.mxu0 0
    %240 = vmatpush1.bf16.xpose.msra.mxu0 %v231
    %241 = vmatprep.subr.bf16.mxu0 0
    %242 = vmatpush1.bf16.xpose.msra.mxu0 0
    %243 = vmatprep.subr.bf16.mxu0 0
    %244 = vmatpush1.bf16.xpose.msra.mxu0 0
    %245 = vmatprep.subr.bf16.mxu0 0
    %246 = vmatpush1.bf16.xpose.msra.mxu0 0
    %247 = vmatprep.subr.bf16.mxu0 0
    %248 = vmatpush1.bf16.xpose.msra.mxu0 0
    %249 = vmatprep.subr.bf16.mxu0 0
    %250 = vmatpush1.bf16.xpose.msra.mxu0 0
    %251 = vmatprep.subr.bf16.mxu0 0
    %252 = vmatpush1.bf16.xpose.msra.mxu0 0
    %253 = vmatprep.subr.bf16.mxu0 0
    %254 = vmatpush1.bf16.xpose.msra.mxu0 0
    %255 = vmatprep.subr.bf16.mxu0 0
    %256 = vmatpush1.bf16.xpose.msra.mxu0 0
    %257 = vmatprep.subr.bf16.mxu0 0
    %258 = vmatpush1.bf16.xpose.msra.mxu0 0
    %259 = vmatprep.subr.bf16.mxu0 0
    %260 = vmatpush1.bf16.xpose.msra.mxu0 0
    %261 = vmatprep.subr.bf16.mxu0 0
    %262 = vmatpush1.bf16.xpose.msra.mxu0 0
    %263 = vmatprep.subr.bf16.mxu0 0
    %264 = vmatpush1.bf16.xpose.msra.mxu0 0
    %265 = vmatprep.subr.bf16.mxu0 0
    %266 = vmatpush1.bf16.xpose.msra.mxu0 0
    %267 = vmatprep.subr.bf16.mxu0 0
    %268 = vmatpush1.bf16.xpose.msra.mxu0 0
    %269 = vmatprep.subr.bf16.mxu0 0
    %270 = vmatpush1.bf16.xpose.msra.mxu0 0
    %271 = vmatprep.mubr.bf16.mxu0 0
    %272 = vmatmul.mubr.bf16.gmra.mrb[0].mxu0 %v232
    %v273 = vpop.f32.mrb[0].mxu0
    %v274 = vadd.f32 %v237, %v273
    %v275 = vpop.f32.mrb[0].mxu0
    %v276 = vpop.f32.mrb[0].mxu0
    %v277 = vpop.f32.mrb[0].mxu0
    %278 = vdwg.mxu0
    %vm279 = vcmask 64512
    %280 = vst.msk [vmem:[#allocation7] sm:$0xff] %vm279, %v274
    // Predicated region
    $region38: #{tpu_custom_call.1} parent=1 // pred_check
      _
    $region39: #{tpu_custom_call.1} parent=1 // pred_check_branch
      %282 = sbr.rel (0) target = $region41
    $region40: #{tpu_custom_call.1} parent=1 // pred_region
      %s284 = ssub.s32 128, 128
      %285 = vsyncadd [#allocation4], %s284
      %s287 = sshll.u32 [#allocation7], 4
      %s288 = int_to_ptr.vmem [resolvable:$true] %s287
      %290 = dma.vmem_to_hbm [thread:$0]  %s288, 128, %s7, [#allocation4]
    $region41: #{tpu_custom_call.1} parent=1 // pred_fallthru
      _
    // Predicated region
    $region42: #{tpu_custom_call.1} parent=1 // pred_check
      _
    $region43: #{tpu_custom_call.1} parent=1 // pred_check_branch
      %292 = sbr.rel (0) target = $region45
    $region44: #{tpu_custom_call.1} parent=1 // pred_region
      %293 = dma.done [#allocation4], 128
    $region45: #{tpu_custom_call.1} parent=1 // pred_fallthru
      _
    %294 = vsyncpa [#allocation3], 1
    %295 = vsyncpa [#allocation6], 1
    %296 = vsyncpa [#allocation4], 1

</llo_original>
